<compile_context>
chip_gen: v7x
topology: tpu7x:2x2x1
jax: 0.10.0
libtpu: 0.0.40
codegen_flags: <defaults>
</compile_context>

<pallas_src>
import functools

import jax
import jax.numpy as jnp
import numpy as np
from jax.experimental import pallas as pl
from jax.experimental.pallas import tpu as pltpu

# Mirrors the module-level globals used by the PyTorch code.
block_size = (4, 4)
nblocks = 8


def _round_up(x, m):
    return -(-x // m) * m


def _pick_tile_m(m_padded, target, min_steps=8, min_tile=16384):
    """Largest 128-multiple tile <= target, preferring >= min_steps grid steps."""
    tile = min(_round_up(int(target), 128), m_padded)
    cap = (m_padded // min_steps) // 128 * 128   # biggest tile giving >= min_steps
    if cap >= min_tile:
        tile = min(tile, cap)
    return max(tile, 128)


def _mse_kernel(b_ref, bsq_ref, t_ref, o_ref, *, inv_k):
    t = t_ref[...]                                            # (K, TM) bf16, lane-dense
    # One MXU matmul per step: (N, K) @ (K, TM) -> (N, TM), f32 accumulation.
    cross = jnp.dot(b_ref[...], t, preferred_element_type=jnp.float32)
    tf = t.astype(jnp.float32)                                # upcast only for norms
    t_sq = jnp.sum(tf * tf, axis=0, keepdims=True) * inv_k    # (1, TM)
    # bsq_ref holds ||block_bf16||^2 / K (hoisted to glue, same bf16 values as LHS).
    mse = bsq_ref[...] + t_sq - (2.0 * inv_k) * cross         # (N, TM)
    o_ref[...] = jnp.maximum(mse, 0.0)                        # clamp f32 rounding residue


def tile_mse_matcher(blocks, target_img, *, tile_m=32768):
    bh, bw = block_size
    K = bh * bw
    B, C, H, W = target_img.shape
    assert C == 1, "TileMSEMatcher view(-1, 1, K, L) path assumes 1 channel"
    assert H % bh == 0 and W % bw == 0
    Hp, Wp = H // bh, W // bw
    L = Hp * Wp
    M = B * L
    N = nblocks

    # --- glue: Unfold with stride == kernel is a pure reshape/transpose ---
    # tiles_km[i*bw + j, b*L + p*Wp + q] = img[b, 0, p*bh + i, q*bw + j]
    # Produced directly in bf16 so the materialized tiles cost half the HBM
    # write here and half the kernel's read.
    tiles = target_img.reshape(B, Hp, bh, Wp, bw).astype(jnp.bfloat16)
    tiles_km = tiles.transpose(2, 4, 0, 1, 3).reshape(K, M)           # (K, M) bf16

    blocks_bf = blocks.reshape(N, K).astype(jnp.bfloat16)             # (N, K) MXU LHS
    # ||b||^2/K from the *bf16-rounded* blocks -> mse == mean((t_bf - b_bf)^2)
    # exactly up to f32 accumulation (no catastrophic cancellation).
    bsq_k = jnp.sum(jnp.square(blocks_bf.astype(jnp.float32)),
                    axis=1, keepdims=True) * (1.0 / K)                # (N, 1) f32

    # Pad M at most to a multiple of 128 (fuses with the transpose/cast above);
    # no full pad to a tile_m multiple -- ragged last block is fine.
    M128 = _round_up(M, 128)
    if M128 != M:
        tiles_km = jnp.pad(tiles_km, ((0, 0), (0, M128 - M)))

    tile_m = _pick_tile_m(M128, tile_m)
    grid = (pl.cdiv(M128, tile_m),)

    kern = functools.partial(_mse_kernel, inv_k=1.0 / K)
    out_nm = pl.pallas_call(
        kern,
        out_shape=jax.ShapeDtypeStruct((N, M128), jnp.float32),
        grid=grid,
        in_specs=[
            pl.BlockSpec((N, K), lambda i: (0, 0)),        # blocks (bf16), resident
            pl.BlockSpec((N, 1), lambda i: (0, 0)),        # ||b||^2/K, resident
            pl.BlockSpec((K, tile_m), lambda i: (0, i)),   # tiles (bf16), lane-dense
        ],
        out_specs=pl.BlockSpec((N, tile_m), lambda i: (0, i)),
        compiler_params=pltpu.CompilerParams(
            dimension_semantics=("parallel",),
            vmem_limit_bytes=32 * 1024 * 1024,
        ),
    )(blocks_bf, bsq_k, tiles_km)

    # (N, M) -> (B, L, N) == PyTorch output after .permute(0, 2, 1)
    return out_nm[:, :M].T.reshape(B, L, N)


def tile_mse_reference(blocks, target_img):
    """Pure-JAX f32 reference matching the PyTorch broadcast formulation."""
    bh, bw = block_size
    K = bh * bw
    B, _, H, W = target_img.shape
    Hp, Wp = H // bh, W // bw
    tiles = target_img.reshape(B, Hp, bh, Wp, bw)
    tiles = tiles.transpose(0, 1, 3, 2, 4).reshape(B, Hp * Wp, K)
    b = blocks.reshape(nblocks, K)
    diff = tiles[:, :, None, :] - b[None, None, :, :]   # (B, L, N, K)
    return jnp.mean(diff * diff, axis=-1)               # (B, L, N)


if __name__ == "__main__":
    key = jax.random.PRNGKey(0)
    k_blocks, k_img = jax.random.split(key)

    # Small shapes consistent with the forward: B=2, C=1, 16x16 image,
    # 4x4 tiles (K=16, L=16 tiles per image), nblocks=8.
    blocks = jax.random.normal(k_blocks, (nblocks, *block_size), dtype=jnp.float32)
    target_img = jax.random.normal(k_img, (2, 1, 16, 16), dtype=jnp.float32)

    matcher = jax.jit(tile_mse_matcher)
    out = jax.block_until_ready(matcher(blocks, target_img))

    ref = tile_mse_reference(blocks, target_img)
    # bf16 storage of tiles/blocks -> loose-ish tolerance vs the f32 reference.
    np.testing.assert_allclose(np.asarray(out), np.asarray(ref),
                               atol=5e-2, rtol=5e-2)
    assert out.shape == (2, 16, nblocks)
    assert float(jnp.min(out)) >= 0.0

    print("KERNEL_OK")
</pallas_src>

<mosaic_0001>
module attributes {stable_mosaic.version = 11 : i64} {
  func.func @_mse_kernel(%arg0: i32, %arg1: memref<8x16xbf16, #tpu.memory_space<vmem>>, %arg2: memref<8x1xf32, #tpu.memory_space<vmem>>, %arg3: memref<16x128xbf16, #tpu.memory_space<vmem>>, %arg4: memref<8x128xf32, #tpu.memory_space<vmem>>) attributes {dimension_semantics = [#tpu.dimension_semantics<parallel>], iteration_bounds = array<i64: 1>, scalar_prefetch = 0 : i64, scratch_operands = 0 : i64, tpu.core_type = #tpu.core_type<tc>, window_params = [{pipeline_mode = #tpu.pipeline_mode<synchronous>, transform_indices = @transform_0, window_bounds = array<i64: 8, 16>}, {pipeline_mode = #tpu.pipeline_mode<synchronous>, transform_indices = @transform_1, window_bounds = array<i64: 8, 1>}, {transform_indices = @transform_2, window_bounds = array<i64: 16, 128>}, {transform_indices = @transform_3, window_bounds = array<i64: 8, 128>}]} {
    %c0 = arith.constant 0 : index
    %c0_0 = arith.constant 0 : index
    %0 = vector.load %arg3[%c0, %c0_0] : memref<16x128xbf16, #tpu.memory_space<vmem>>, vector<16x128xbf16>
    %c0_1 = arith.constant 0 : index
    %c0_2 = arith.constant 0 : index
    %1 = vector.load %arg1[%c0_1, %c0_2] : memref<8x16xbf16, #tpu.memory_space<vmem>>, vector<8x16xbf16>
    %cst = arith.constant dense<0.000000e+00> : vector<8x128xf32>
    %2 = tpu.matmul %1, %0, %cst {dimension_numbers = #tpu.dot_dimension_numbers<[1], [0], [0], [1], [0, 0, 1, 1], [], []>} : vector<8x16xbf16>, vector<16x128xbf16>, vector<8x128xf32> -> vector<8x128xf32>
    %3 = arith.extf %0 : vector<16x128xbf16> to vector<16x128xf32>
    %4 = arith.mulf %3, %3 : vector<16x128xf32>
    %cst_3 = arith.constant dense<0.000000e+00> : vector<128xf32>
    %5 = vector.multi_reduction <add>, %4, %cst_3 [0] : vector<16x128xf32> to vector<128xf32>
    %6 = vector.shape_cast %5 : vector<128xf32> to vector<1x128xf32>
    %cst_4 = arith.constant 6.250000e-02 : f32
    %7 = vector.broadcast %cst_4 : f32 to vector<1x128xf32>
    %8 = arith.mulf %6, %7 : vector<1x128xf32>
    %c0_5 = arith.constant 0 : index
    %c0_6 = arith.constant 0 : index
    %9 = vector.load %arg2[%c0_5, %c0_6] : memref<8x1xf32, #tpu.memory_space<vmem>>, vector<8x1xf32>
    %10 = vector.broadcast %9 : vector<8x1xf32> to vector<8x128xf32>
    %11 = vector.broadcast %8 : vector<1x128xf32> to vector<8x128xf32>
    %12 = arith.addf %10, %11 : vector<8x128xf32>
    %cst_7 = arith.constant 1.250000e-01 : f32
    %13 = vector.broadcast %cst_7 : f32 to vector<8x128xf32>
    %14 = arith.mulf %13, %2 : vector<8x128xf32>
    %15 = arith.subf %12, %14 : vector<8x128xf32>
    %cst_8 = arith.constant 0.000000e+00 : f32
    %16 = vector.broadcast %cst_8 : f32 to vector<8x128xf32>
    %17 = arith.maximumf %15, %16 : vector<8x128xf32>
    %c0_9 = arith.constant 0 : index
    %c0_10 = arith.constant 0 : index
    %18 = vector.load %arg4[%c0_9, %c0_10] : memref<8x128xf32, #tpu.memory_space<vmem>>, vector<8x128xf32>
    tpu.vector_store %arg4[%c0_9, %c0_10], %17 {strides = array<i32>} : memref<8x128xf32, #tpu.memory_space<vmem>>, vector<8x128xf32>,
    return
  }
  func.func @transform_0(%arg0: i32) -> (i32, i32) {
    %c0_i32 = arith.constant 0 : i32
    %c0_i32_0 = arith.constant 0 : i32
    %c0_i32_1 = arith.constant 0 : i32
    return %c0_i32, %c0_i32_0 : i32, i32
  }
  func.func @transform_1(%arg0: i32) -> (i32, i32) {
    %c0_i32 = arith.constant 0 : i32
    %c0_i32_0 = arith.constant 0 : i32
    %c0_i32_1 = arith.constant 0 : i32
    return %c0_i32, %c0_i32_0 : i32, i32
  }
  func.func @transform_2(%arg0: i32) -> (i32, i32) {
    %c0_i32 = arith.constant 0 : i32
    %c0_i32_0 = arith.constant 0 : i32
    return %c0_i32, %arg0 : i32, i32
  }
  func.func @transform_3(%arg0: i32) -> (i32, i32) {
    %c0_i32 = arith.constant 0 : i32
    %c0_i32_0 = arith.constant 0 : i32
    return %c0_i32, %arg0 : i32, i32
  }
}

</mosaic_0001>

<llo_original>
// kernel: tile_mse_matcher.1
$region0: #{tile_mse_matcher.1}
  #allocation0 [shape = 'u32[]', space=smem, size = 0x4, offset = 0x4, fixed_abs, tag = 'smem constant byte address 0x4 - core index']
  #allocation1 [shape = 'u32[144,128]{1,0:T(1,128)}', space=vmem, size = 0x12000, scoped, tag = 'internal scratch']
  %s0 = inlined_call_operand.vmem [shape: bf16[8,16], index: 0, kind: input, shape index: {}]
  %s1 = inlined_call_operand.vmem [shape: f32[8,1], index: 1, kind: input, shape index: {}]
  %s2 = inlined_call_operand.vmem [shape: bf16[16,128], index: 2, kind: input, shape index: {}]
  %s3 = inlined_call_operand.vmem [shape: f32[8,128], index: 3, kind: output, shape index: {}]
  %s4 = sld [smem:[#allocation0]]
  $region22: #{tile_mse_matcher.1} parent=0
    _
  %s6 = ssub.s32 1, %s4
  %s7 = scalar_select 0, %s6, %s4
  // Predicated region
  $region2: #{tile_mse_matcher.1} parent=0 // pred_check
    _
  $region3: #{tile_mse_matcher.1} parent=0 // pred_check_branch
    %9 = sbr.rel (0) target = $region5
  $region4: #{tile_mse_matcher.1} parent=0 // pred_region
    _
  $region5: #{tile_mse_matcher.1} parent=0 // pred_fallthru
    _
  // Predicated region
  $region6: #{tile_mse_matcher.1} parent=0 // pred_check
    _
  $region7: #{tile_mse_matcher.1} parent=0 // pred_check_branch
    %11 = sbr.rel (0) target = $region9
  $region8: #{tile_mse_matcher.1} parent=0 // pred_region
    _
  $region9: #{tile_mse_matcher.1} parent=0 // pred_fallthru
    _
  // Predicated region
  $region10: #{tile_mse_matcher.1} parent=0 // pred_check
    _
  $region11: #{tile_mse_matcher.1} parent=0 // pred_check_branch
    %13 = sbr.rel (0) target = $region13
  $region12: #{tile_mse_matcher.1} parent=0 // pred_region
    _
  $region13: #{tile_mse_matcher.1} parent=0 // pred_fallthru
    _
  %v15 = vld [vmem:[%s2] sm:$0xf]
  %v16 = vld [vmem:[%s2 + $0x4] sm:$0xf]
  %v17 = vld [vmem:[%s0] sm:$0xf]
  %v20 = vunpack.c.l.b16 %v15
  %v21 = vunpack.c.l.b16 %v16
  %v22 = vpack.c.b16 %v21, %v20
  %vm24 = vcmask 130048
  %v26 = vsel %vm24, %v17, 0
  %28 = vmatprep.subr.bf16.mxu0 0
  %29 = vmatpush1.bf16.msra.mxu0 %v22
  %30 = vmatprep.subr.bf16.mxu0 0
  %31 = vmatpush1.bf16.msra.mxu0 0
  %32 = vmatprep.subr.bf16.mxu0 0
  %33 = vmatpush1.bf16.msra.mxu0 0
  %34 = vmatprep.subr.bf16.mxu0 0
  %35 = vmatpush1.bf16.msra.mxu0 0
  %36 = vmatprep.subr.bf16.mxu0 0
  %37 = vmatpush1.bf16.msra.mxu0 0
  %38 = vmatprep.subr.bf16.mxu0 0
  %39 = vmatpush1.bf16.msra.mxu0 0
  %40 = vmatprep.subr.bf16.mxu0 0
  %41 = vmatpush1.bf16.msra.mxu0 0
  %42 = vmatprep.subr.bf16.mxu0 0
  %43 = vmatpush1.bf16.msra.mxu0 0
  %44 = vmatprep.subr.bf16.mxu0 0
  %45 = vmatpush1.bf16.msra.mxu0 0
  %46 = vmatprep.subr.bf16.mxu0 0
  %47 = vmatpush1.bf16.msra.mxu0 0
  %48 = vmatprep.subr.bf16.mxu0 0
  %49 = vmatpush1.bf16.msra.mxu0 0
  %50 = vmatprep.subr.bf16.mxu0 0
  %51 = vmatpush1.bf16.msra.mxu0 0
  %52 = vmatprep.subr.bf16.mxu0 0
  %53 = vmatpush1.bf16.msra.mxu0 0
  %54 = vmatprep.subr.bf16.mxu0 0
  %55 = vmatpush1.bf16.msra.mxu0 0
  %56 = vmatprep.subr.bf16.mxu0 0
  %57 = vmatpush1.bf16.msra.mxu0 0
  %58 = vmatprep.subr.bf16.mxu0 0
  %59 = vmatpush1.bf16.msra.mxu0 0
  %60 = vmatprep.mubr.bf16.mxu0 0
  %61 = vmatmul.mubr.bf16.gmra.mrb[0].mxu0 %v26
  %v62 = vpop.f32.mrb[0].mxu0
  %v63 = vadd.f32 0.0, %v62
  %v64 = vpop.f32.mrb[0].mxu0
  %v65 = vpop.f32.mrb[0].mxu0
  %v66 = vpop.f32.mrb[0].mxu0
  %67 = vdwg.mxu0
  %v68 = vunpack.c.l.bf16 %v15
  %v69 = vunpack.c.l.bf16 %v16
  %v70 = vmul.f32 %v68, %v68
  %v71 = vmul.f32 %v69, %v69
  %v72 = vadd.f32 %v70, %v71
  %v73 = vrot.slane %v72, 4
  %v74 = vadd.f32 %v72, %v73
  %v75 = vrot.slane %v74, 2
  %v76 = vadd.f32 %v74, %v75
  %v77 = vrot.slane %v76, 1
  %v78 = vadd.f32 %v76, %v77
  %v79 = vmul.f32 %v78, 0.0625
  %v80 = vld [vmem:[%s1] sm:$0xff]
  %82 = vset.pattern.permute.xlu0 0
  %83 = vperm.xlu0 %82, %v80
  %v84 = vpop.permute.xlu0 %83
  %v86 = vadd.f32 %v84, %v79
  %v87 = vmul.f32 %v63, 0.125
  %v88 = vsub.f32 %v86, %v87
  %v89 = vmax.f32 %v88, 0.0
  %90 = vst [vmem:[%s3] sm:$0xff] %v89
  // Predicated region
  $region14: #{tile_mse_matcher.1} parent=0 // pred_check
    _
  $region15: #{tile_mse_matcher.1} parent=0 // pred_check_branch
    %92 = sbr.rel (0) target = $region17
  $region16: #{tile_mse_matcher.1} parent=0 // pred_region
    _
  $region17: #{tile_mse_matcher.1} parent=0 // pred_fallthru
    _
  // Predicated region
  $region18: #{tile_mse_matcher.1} parent=0 // pred_check
    _
  $region19: #{tile_mse_matcher.1} parent=0 // pred_check_branch
    %94 = sbr.rel (0) target = $region21
  $region20: #{tile_mse_matcher.1} parent=0 // pred_region
    _
  $region21: #{tile_mse_matcher.1} parent=0 // pred_fallthru
    _

</llo_original>
